<compile_context>
chip_gen: v7x
topology: tpu7x:2x2x1
jax: 0.10.0
libtpu: 0.0.40
codegen_flags: <defaults>
</compile_context>

<pallas_src>
import functools

import jax
import jax.numpy as jnp
from jax.experimental import pallas as pl
from jax.experimental.pallas import tpu as pltpu

# Safe on every generation: well under v7x's 64 MiB physical VMEM, and an
# explicit raise above v5e's 16 MiB scoped default.
_VMEM_LIMIT_BYTES = 32 * 1024 * 1024


def _pick_block(dim: int, unit: int, target: int) -> int:
    """Largest multiple of `unit` that divides `dim` and is <= min(dim, target).

    Falls back to the full extent (always a legal block size).  Keeping blocks
    as multiples of (8, 128) on the tiled dims keeps loads/stores unmasked.
    """
    best = None
    cap = min(dim, target)
    m = unit
    while m <= cap:
        if dim % m == 0:
            best = m
        m += unit
    return best if best is not None else dim


def _reduce_kernel(x_ref, o_ref, acc_ref, *, scale: float):
    # x_ref: (BB, TT, TD) input tile; o_ref: (BB, TD); acc_ref: (BB, TD) f32.
    t = pl.program_id(2)

    @pl.when(t == 0)
    def _():
        acc_ref[...] = jnp.zeros_like(acc_ref)

    # Accumulate in float32 regardless of input dtype (free: kernel is
    # HBM-bandwidth bound; avoids bf16 error growth with large T).
    acc_ref[...] += jnp.sum(x_ref[...].astype(jnp.float32), axis=1)

    @pl.when(t == pl.num_programs(2) - 1)
    def _():
        o_ref[...] = (acc_ref[...] * scale).astype(o_ref.dtype)


def _pick_kernel(x_ref, o_ref):
    # x_ref: (BB, TD) -- the time dim is squeezed away by the BlockSpec, so
    # only the selected time row was DMA'd from HBM.  Straight copy/cast.
    o_ref[...] = x_ref[...].astype(o_ref.dtype)


def aggregation(
    x: jax.Array,
    mode: str = "mean",
    idx: int = -1,
    *,
    block_b: int | None = None,
    block_t: int | None = None,
    block_d: int | None = None,
) -> jax.Array:
    """Pallas equivalent of Aggregation(mode=mode, dim=1, idx=idx)(x), x: [B,T,D]."""
    if mode not in ("sum", "mean", "pick"):
        raise ValueError(f"Unsupported aggregation mode: {mode}")
    B, T, D = x.shape

    # Tile sizes: keep input tiles a few MiB (<= 8*256*512*4B = 4 MiB for f32),
    # output blocks sublane/lane dense (multiples of 8 / 128 or full extents).
    bb = block_b if block_b is not None else _pick_block(B, 8, 8)
    td = block_d if block_d is not None else _pick_block(D, 128, 512)

    if mode == "pick":
        # idx is a static Python int (matches the PyTorch module, where idx is
        # a constructor argument), so it can live directly in the index_map.
        # A runtime idx would instead need num_scalar_prefetch=1.
        pick_t = idx % T  # Python-style negative indexing
        grid = (B // bb, D // td)
        out2d = pl.pallas_call(
            _pick_kernel,
            out_shape=jax.ShapeDtypeStruct((B, D), x.dtype),
            grid_spec=pltpu.PrefetchScalarGridSpec(
                num_scalar_prefetch=0,
                grid=grid,
                # Squeezed time dim: the DMA only reads the single picked row.
                in_specs=[
                    pl.BlockSpec((bb, None, td), lambda b, d: (b, pick_t, d))
                ],
                out_specs=pl.BlockSpec((bb, td), lambda b, d: (b, d)),
            ),
            compiler_params=pltpu.CompilerParams(
                dimension_semantics=("parallel", "parallel"),
                vmem_limit_bytes=_VMEM_LIMIT_BYTES,
            ),
        )(x)
        # torch.index_select keeps the picked (size-1) dim; reshape is metadata-only.
        return out2d.reshape(B, 1, D)

    # sum / mean: tiled reduction over T (trailing "arbitrary" grid axis),
    # resident f32 accumulator, dense (BB, TD) output blocks.
    tt = block_t if block_t is not None else _pick_block(T, 8, 256)
    grid = (B // bb, D // td, T // tt)
    scale = (1.0 / T) if mode == "mean" else 1.0
    kernel = functools.partial(_reduce_kernel, scale=scale)

    return pl.pallas_call(
        kernel,
        out_shape=jax.ShapeDtypeStruct((B, D), x.dtype),
        grid_spec=pltpu.PrefetchScalarGridSpec(
            num_scalar_prefetch=0,
            grid=grid,
            in_specs=[pl.BlockSpec((bb, tt, td), lambda b, d, t: (b, t, d))],
            # Output block index is constant in t -> block stays resident in
            # VMEM across the reduction axis (single HBM writeback per (b, d)).
            out_specs=pl.BlockSpec((bb, td), lambda b, d, t: (b, d)),
            scratch_shapes=[pltpu.VMEM((bb, td), jnp.float32)],
        ),
        compiler_params=pltpu.CompilerParams(
            dimension_semantics=("parallel", "parallel", "arbitrary"),
            vmem_limit_bytes=_VMEM_LIMIT_BYTES,
        ),
    )(x)


if __name__ == "__main__":
    key = jax.random.PRNGKey(0)
    k0, k1 = jax.random.split(key)

    # Small shape (single-tile path).
    B, T, D = 2, 8, 128
    x = jax.random.normal(k0, (B, T, D), dtype=jnp.float32)

    y_sum = jax.block_until_ready(aggregation(x, mode="sum"))
    assert y_sum.shape == (B, D)
    assert jnp.allclose(y_sum, jnp.sum(x, axis=1), atol=1e-5, rtol=1e-5)

    y_mean = jax.block_until_ready(aggregation(x, mode="mean"))
    assert y_mean.shape == (B, D)
    assert jnp.allclose(y_mean, jnp.mean(x, axis=1), atol=1e-5, rtol=1e-5)

    y_pick = jax.block_until_ready(aggregation(x, mode="pick", idx=-1))
    assert y_pick.shape == (B, 1, D)
    assert jnp.allclose(y_pick, x[:, T - 1 : T, :])

    y_pick0 = jax.block_until_ready(aggregation(x, mode="pick", idx=0))
    assert jnp.allclose(y_pick0, x[:, 0:1, :])

    # Slightly larger shape forcing the tiled-reduction path (nd=2, nt=4).
    B2, T2, D2 = 4, 32, 256
    x2 = jax.random.normal(k1, (B2, T2, D2), dtype=jnp.float32)

    y2_mean = jax.block_until_ready(
        aggregation(x2, mode="mean", block_t=8, block_d=128)
    )
    assert y2_mean.shape == (B2, D2)
    assert jnp.allclose(y2_mean, jnp.mean(x2, axis=1), atol=1e-5, rtol=1e-5)

    y2_sum = jax.block_until_ready(
        aggregation(x2, mode="sum", block_t=8, block_d=128)
    )
    assert jnp.allclose(y2_sum, jnp.sum(x2, axis=1), atol=1e-4, rtol=1e-5)

    print("KERNEL_OK")
</pallas_src>

<mosaic_0001>
module attributes {stable_mosaic.version = 11 : i64} {
  func.func @_reduce_kernel(%arg0: i32, %arg1: i32, %arg2: i32, %arg3: memref<2x8x128xf32, #tpu.memory_space<vmem>>, %arg4: memref<2x128xf32, #tpu.memory_space<vmem>>, %arg5: memref<2x128xf32, #tpu.memory_space<vmem>>) attributes {dimension_semantics = [#tpu.dimension_semantics<parallel>, #tpu.dimension_semantics<parallel>, #tpu.dimension_semantics<arbitrary>], iteration_bounds = array<i64: 1, 1, 1>, scalar_prefetch = 0 : i64, scratch_operands = 1 : i64, tpu.core_type = #tpu.core_type<tc>, window_params = [{transform_indices = @transform_0, window_bounds = array<i64: 2, 8, 128>}, {transform_indices = @transform_1, window_bounds = array<i64: 2, 128>}]} {
    %c0_i32 = arith.constant 0 : i32
    %0 = arith.cmpi eq, %arg2, %c0_i32 : i32
    %1 = arith.extui %0 : i1 to i32
    %c0_i32_0 = arith.constant 0 : i32
    %2 = arith.cmpi ne, %1, %c0_i32_0 : i32
    scf.if %2 {
      %cst_9 = arith.constant 0.000000e+00 : f32
      %11 = vector.broadcast %cst_9 : f32 to vector<2x128xf32>
      %c0_10 = arith.constant 0 : index
      %c0_11 = arith.constant 0 : index
      %12 = vector.load %arg5[%c0_10, %c0_11] : memref<2x128xf32, #tpu.memory_space<vmem>>, vector<2x128xf32>
      tpu.vector_store %arg5[%c0_10, %c0_11], %11 {strides = array<i32>} : memref<2x128xf32, #tpu.memory_space<vmem>>, vector<2x128xf32>,
    } else {
    }
    %c0 = arith.constant 0 : index
    %c0_1 = arith.constant 0 : index
    %3 = vector.load %arg5[%c0, %c0_1] : memref<2x128xf32, #tpu.memory_space<vmem>>, vector<2x128xf32>
    %c0_2 = arith.constant 0 : index
    %c0_3 = arith.constant 0 : index
    %c0_4 = arith.constant 0 : index
    %4 = vector.load %arg3[%c0_2, %c0_3, %c0_4] : memref<2x8x128xf32, #tpu.memory_space<vmem>>, vector<2x8x128xf32>
    %cst = arith.constant dense<0.000000e+00> : vector<2x128xf32>
    %5 = vector.multi_reduction <add>, %4, %cst [1] : vector<2x8x128xf32> to vector<2x128xf32>
    %6 = arith.addf %3, %5 : vector<2x128xf32>
    %c0_5 = arith.constant 0 : index
    %c0_6 = arith.constant 0 : index
    %7 = vector.load %arg5[%c0_5, %c0_6] : memref<2x128xf32, #tpu.memory_space<vmem>>, vector<2x128xf32>
    tpu.vector_store %arg5[%c0_5, %c0_6], %6 {strides = array<i32>} : memref<2x128xf32, #tpu.memory_space<vmem>>, vector<2x128xf32>,
    %c0_i32_7 = arith.constant 0 : i32
    %8 = arith.cmpi eq, %arg2, %c0_i32_7 : i32
    %9 = arith.extui %8 : i1 to i32
    %c0_i32_8 = arith.constant 0 : i32
    %10 = arith.cmpi ne, %9, %c0_i32_8 : i32
    scf.if %10 {
      %c0_9 = arith.constant 0 : index
      %c0_10 = arith.constant 0 : index
      %11 = vector.load %arg5[%c0_9, %c0_10] : memref<2x128xf32, #tpu.memory_space<vmem>>, vector<2x128xf32>
      %cst_11 = arith.constant 1.000000e+00 : f32
      %12 = vector.broadcast %cst_11 : f32 to vector<2x128xf32>
      %13 = arith.mulf %11, %12 : vector<2x128xf32>
      %c0_12 = arith.constant 0 : index
      %c0_13 = arith.constant 0 : index
      %14 = vector.load %arg4[%c0_12, %c0_13] : memref<2x128xf32, #tpu.memory_space<vmem>>, vector<2x128xf32>
      tpu.vector_store %arg4[%c0_12, %c0_13], %13 {strides = array<i32>} : memref<2x128xf32, #tpu.memory_space<vmem>>, vector<2x128xf32>,
    } else {
    }
    return
  }
  func.func @transform_0(%arg0: i32, %arg1: i32, %arg2: i32) -> (i32, i32, i32) {
    %c0_i32 = arith.constant 0 : i32
    return %arg0, %arg2, %arg1 : i32, i32, i32
  }
  func.func @transform_1(%arg0: i32, %arg1: i32, %arg2: i32) -> (i32, i32) {
    %c0_i32 = arith.constant 0 : i32
    return %arg0, %arg1 : i32, i32
  }
}

</mosaic_0001>

<llo_original>
// kernel: tpu_custom_call.1
$region0: #{tpu_custom_call.1}
  #allocation0 [shape = 'u32[]', space=smem, size = 0x4, offset = 0x4, fixed_abs, tag = 'smem constant byte address 0x4 - core index']
  #allocation1 [shape = 'u32[144,128]{1,0:T(1,128)}', space=vmem, size = 0x12000, scoped, tag = 'internal scratch']
  #allocation2 [shape = 'f32[2,128]{1,0:T(2,128)}', space=vmem, size = 0x400, scoped, tag = 'scratch operand']
  %s0 = inlined_call_operand.hbm [shape: f32[2,8,128], index: 0, kind: input, shape index: {}]
  %s1 = inlined_call_operand.hbm [shape: f32[2,128], index: 1, kind: output, shape index: {}]
  %s2 = sld [smem:[#allocation0]]
  $region26: #{tpu_custom_call.1} parent=0
    _
  %s4 = ssub.s32 1, %s2
  %s5 = scalar_select 0, %s4, %s2
  $region1: #{tpu_custom_call.1} parent=0
    #allocation3 [shape = 'u8[8192]{0}', space=vmem, size = 0x2000, scoped, tag = 'input window, operand 0, single buffered']
    #allocation4 [shape = 's32[1]{0}', space=sflag, size = 0x4, scoped, tag = 'scoped memory for tpu_custom_call.1']
    #allocation5 [shape = 's32[1]{0}', space=sflag, size = 0x4, scoped, tag = 'scoped memory for tpu_custom_call.1']
    #allocation6 [shape = 'u8[1024]{0}', space=vmem, size = 0x400, scoped, tag = 'output window, operand 0, single buffered']
    %6 = vsyncpa [#allocation4], 0
    %7 = vsyncpa [#allocation5], 0
    // Predicated region
    $region2: #{tpu_custom_call.1} parent=1 // pred_check
      _
    $region3: #{tpu_custom_call.1} parent=1 // pred_check_branch
      %9 = sbr.rel (0) target = $region5
    $region4: #{tpu_custom_call.1} parent=1 // pred_region
      %s11 = ssub.s32 256, 256
      %12 = vsyncadd [#allocation4], %s11
      %s13 = sshll.u32 [#allocation3], 4
      %s14 = int_to_ptr.vmem [resolvable:$true] %s13
      %19 = dma.hbm_to_vmem [thread:$0]  %s0, 256, %s14, [#allocation4], 128, 128, 8
    $region5: #{tpu_custom_call.1} parent=1 // pred_fallthru
      _
    // Predicated region
    $region6: #{tpu_custom_call.1} parent=1 // pred_check
      _
    $region7: #{tpu_custom_call.1} parent=1 // pred_check_branch
      %21 = sbr.rel (0) target = $region9
    $region8: #{tpu_custom_call.1} parent=1 // pred_region
      %22 = dma.done [#allocation4], 256
    $region9: #{tpu_custom_call.1} parent=1 // pred_fallthru
      _
    %p23 = scmp.eq.s32.totalorder 0, 0
    // Predicated region
    $region10: #{tpu_custom_call.1} parent=1 // pred_check
      %p24 = pneg %p23
    $region11: #{tpu_custom_call.1} parent=1 // pred_check_branch
      %26 = sbr.rel (%p24) target = $region13
    $region12: #{tpu_custom_call.1} parent=1 // pred_region
      %27 = vst [vmem:[#allocation2] sm:$0x3] 0.0
    $region13: #{tpu_custom_call.1} parent=1 // pred_fallthru
      _
    %v28 = vld [vmem:[#allocation2] sm:$0x3]
    %v29 = vld [vmem:[#allocation3] sm:$0xff]
    %v30 = vld [vmem:[#allocation3 + $0x8] sm:$0xff]
    %v31 = vrot.slane %v29, 4
    %v32 = vadd.f32 %v29, %v31
    %v33 = vrot.slane %v32, 2
    %v34 = vadd.f32 %v32, %v33
    %v35 = vrot.slane %v34, 1
    %v36 = vadd.f32 %v34, %v35
    %v37 = vrot.slane %v30, 4
    %v38 = vadd.f32 %v30, %v37
    %v39 = vrot.slane %v38, 2
    %v40 = vadd.f32 %v38, %v39
    %v41 = vrot.slane %v40, 1
    %v42 = vadd.f32 %v40, %v41
    %vm45 = vcmask 1041409
    %v46 = vsel %vm45, %v42, %v36
    %v48 = vadd.f32 %v28, %v46
    %49 = vst [vmem:[#allocation2] sm:$0x3] %v48
    // Predicated region
    $region14: #{tpu_custom_call.1} parent=1 // pred_check
      %p50 = pneg %p23
    $region15: #{tpu_custom_call.1} parent=1 // pred_check_branch
      %52 = sbr.rel (%p50) target = $region17
    $region16: #{tpu_custom_call.1} parent=1 // pred_region
      %v53 = vld [vmem:[#allocation2] sm:$0x3]
      %54 = vst [vmem:[#allocation6] sm:$0x3] %v53
    $region17: #{tpu_custom_call.1} parent=1 // pred_fallthru
      _
    // Predicated region
    $region18: #{tpu_custom_call.1} parent=1 // pred_check
      _
    $region19: #{tpu_custom_call.1} parent=1 // pred_check_branch
      %56 = sbr.rel (0) target = $region21
    $region20: #{tpu_custom_call.1} parent=1 // pred_region
      %s58 = ssub.s32 32, 32
      %59 = vsyncadd [#allocation5], %s58
      %s61 = sshll.u32 [#allocation6], 4
      %s62 = int_to_ptr.vmem [resolvable:$true] %s61
      %64 = dma.vmem_to_hbm [thread:$0]  %s62, 32, %s1, [#allocation5]
    $region21: #{tpu_custom_call.1} parent=1 // pred_fallthru
      _
    // Predicated region
    $region22: #{tpu_custom_call.1} parent=1 // pred_check
      _
    $region23: #{tpu_custom_call.1} parent=1 // pred_check_branch
      %66 = sbr.rel (0) target = $region25
    $region24: #{tpu_custom_call.1} parent=1 // pred_region
      %67 = dma.done [#allocation5], 32
    $region25: #{tpu_custom_call.1} parent=1 // pred_fallthru
      _
    %68 = vsyncpa [#allocation4], 1
    %69 = vsyncpa [#allocation5], 1

</llo_original>
